<compile_context>
chip_gen: v7x
topology: tpu7x:2x2x1
jax: 0.10.0
libtpu: 0.0.40
codegen_flags: <defaults>
</compile_context>

<pallas_src>
import functools

import jax
import jax.numpy as jnp
from jax.experimental import pallas as pl
from jax.experimental.pallas import tpu as pltpu


def _round_up(x, m):
    return (x + m - 1) // m * m


def _tae_kernel(t_ref, w_ref, b_ref, o_ref):
    """o[m, j] = sum_r t[m, r] * W_expand[r, j] + b_wide[j].

    t_ref: (tm, g)            time values (g source rows folded per output row)
    w_ref: (g, g * d_model)   block-diagonal expanded weight (f32, resident)
    b_ref: (1, g * d_model)   bias row tiled g times (f32, resident)
    o_ref: (tm, g * d_model)  lane-dense output tile
    """
    t = t_ref[...].astype(jnp.float32)
    acc = jnp.dot(t, w_ref[...], preferred_element_type=jnp.float32)
    o_ref[...] = (acc + b_ref[...]).astype(o_ref.dtype)


def _choose_tm(rows, lane_width, out_bytes, sublane):
    # Budget ~24 MiB for the double-buffered output tile plus the time tile:
    # well inside v7x's 64 MiB VMEM, while large enough (512-2048 rows) to sit
    # in the ~85%+ HBM-roofline regime for mem-bound tiled kernels.
    budget = 24 << 20
    tm = 2048
    while tm > sublane and 2 * tm * lane_width * out_bytes + 2 * tm * 512 > budget:
        tm //= 2
    tm = max(sublane, min(tm, _round_up(rows, sublane)))
    return _round_up(tm, sublane)


def time_augmented_encoding(time_values, weight, bias, *, tm=None, out_dtype=None,
                            vmem_limit_bytes=48 << 20):
    """Pallas TPU forward of nn.Linear(1, d_model) on (B, S, 1) time values.

    time_values: (B, S, 1); weight: (d_model, 1); bias: (d_model,)
    Returns (B, S, d_model) in `out_dtype` (default: time_values.dtype).
    """
    B, S, one = time_values.shape
    assert one == 1
    d_model = weight.shape[0]
    out_dtype = jnp.dtype(out_dtype if out_dtype is not None else time_values.dtype)
    in_bytes = jnp.dtype(time_values.dtype).itemsize
    out_bytes = out_dtype.itemsize
    sublane = 8 if min(in_bytes, out_bytes) >= 4 else 16  # (8,128) f32 / (16,128) bf16

    N = B * S
    t_flat = time_values.reshape(N, 1)
    w_row = weight.reshape(1, d_model).astype(jnp.float32)
    b_row = bias.reshape(1, d_model).astype(jnp.float32)

    # Lane-dense output: fold g rows into one 128-lane output row if d_model<128.
    if d_model < 128 and 128 % d_model == 0:
        g = 128 // d_model
    else:
        g = 1
    lane_width = g * d_model

    # Block-diagonal expanded weight: W_expand[r, r*d:(r+1)*d] = W^T, else 0.
    # out[:, j] = t[:, j // d_model] * W[j % d_model]  after the matmul.
    w_exp = jnp.kron(jnp.eye(g, dtype=jnp.float32), w_row)        # (g, lane_width)
    b_wide = jnp.tile(b_row, (1, g))                               # (1, lane_width)

    rows = _round_up(N, g) // g
    n_fold = rows * g
    if n_fold != N:
        t_flat = jnp.pad(t_flat, ((0, n_fold - N), (0, 0)))
    t_rows = t_flat.reshape(rows, g)

    if tm is None:
        tm = _choose_tm(rows, lane_width, out_bytes, sublane)
    tm = _round_up(min(tm, _round_up(rows, sublane)), sublane)
    rows_pad = _round_up(rows, tm)
    if rows_pad != rows:
        t_rows = jnp.pad(t_rows, ((0, rows_pad - rows), (0, 0)))

    cost = pl.CostEstimate(
        flops=2 * N * d_model,
        transcendentals=0,
        bytes_accessed=N * d_model * out_bytes + N * in_bytes + 2 * d_model * 4,
    )

    out_wide = pl.pallas_call(
        functools.partial(_tae_kernel),
        out_shape=jax.ShapeDtypeStruct((rows_pad, lane_width), out_dtype),
        grid_spec=pltpu.PrefetchScalarGridSpec(
            num_scalar_prefetch=0,
            grid=(rows_pad // tm,),
            in_specs=[
                pl.BlockSpec((tm, g), lambda i: (i, 0)),             # time rows
                pl.BlockSpec((g, lane_width), lambda i: (0, 0)),     # weight (resident)
                pl.BlockSpec((1, lane_width), lambda i: (0, 0)),     # bias (resident)
            ],
            out_specs=pl.BlockSpec((tm, lane_width), lambda i: (i, 0)),
        ),
        compiler_params=pltpu.CompilerParams(
            dimension_semantics=("parallel",),      # shard row tiles across v7x's 2 TCs
            vmem_limit_bytes=vmem_limit_bytes,
        ),
        cost_estimate=cost,
    )(t_rows, w_exp, b_wide)

    if rows_pad != rows:
        out_wide = out_wide[:rows]
    out_flat = out_wide.reshape(rows * g, d_model)
    if n_fold != N:
        out_flat = out_flat[:N]
    # NOTE: if this op feeds another kernel, the biggest win is fusing it there
    # and skipping this standalone (N, d_model) HBM round trip entirely.
    return out_flat.reshape(B, S, d_model)


if __name__ == "__main__":
    key = jax.random.PRNGKey(0)
    k_w, k_b, k_t = jax.random.split(key, 3)

    # Small demo shapes implied by the module: batch=2, seq=8, d_model=32.
    batch, seq, d_model = 2, 8, 32
    weight = jax.random.uniform(k_w, (d_model, 1), jnp.float32, -1.0, 1.0)
    bias = jax.random.uniform(k_b, (d_model,), jnp.float32, -1.0, 1.0)
    time_values = jax.random.normal(k_t, (batch, seq, 1), jnp.float32)

    out = jax.block_until_ready(time_augmented_encoding(time_values, weight, bias))
    ref = time_values @ weight.T + bias
    assert out.shape == (batch, seq, d_model)
    assert jnp.allclose(out, ref, atol=1e-5, rtol=1e-5)

    # Extra shape coverage: unfolded lane-dense case (d_model >= 128) with a
    # ragged row count, and a folded case where N % fold-factor != 0.
    for (b2, s2, d2) in ((3, 5, 256), (1, 7, 32)):
        kw2, kb2, kt2 = jax.random.split(jax.random.PRNGKey(1 + d2), 3)
        w2 = jax.random.uniform(kw2, (d2, 1), jnp.float32, -1.0, 1.0)
        bb2 = jax.random.uniform(kb2, (d2,), jnp.float32, -1.0, 1.0)
        t2 = jax.random.normal(kt2, (b2, s2, 1), jnp.float32)
        o2 = jax.block_until_ready(time_augmented_encoding(t2, w2, bb2))
        r2 = t2 @ w2.T + bb2
        assert o2.shape == (b2, s2, d2)
        assert jnp.allclose(o2, r2, atol=1e-5, rtol=1e-5)

    print("KERNEL_OK")
</pallas_src>

<mosaic_0001>
module attributes {stable_mosaic.version = 11 : i64} {
  func.func @_tae_kernel(%arg0: i32, %arg1: memref<8x4xf32, #tpu.memory_space<vmem>>, %arg2: memref<4x128xf32, #tpu.memory_space<vmem>>, %arg3: memref<1x128xf32, #tpu.memory_space<vmem>>, %arg4: memref<8x128xf32, #tpu.memory_space<vmem>>) attributes {dimension_semantics = [#tpu.dimension_semantics<parallel>], iteration_bounds = array<i64: 1>, scalar_prefetch = 0 : i64, scratch_operands = 0 : i64, tpu.core_type = #tpu.core_type<tc>, window_params = [{transform_indices = @transform_0, window_bounds = array<i64: 8, 4>}, {pipeline_mode = #tpu.pipeline_mode<synchronous>, transform_indices = @transform_1, window_bounds = array<i64: 4, 128>}, {pipeline_mode = #tpu.pipeline_mode<synchronous>, transform_indices = @transform_2, window_bounds = array<i64: 1, 128>}, {transform_indices = @transform_3, window_bounds = array<i64: 8, 128>}]} {
    %c0 = arith.constant 0 : index
    %c0_0 = arith.constant 0 : index
    %0 = vector.load %arg1[%c0, %c0_0] : memref<8x4xf32, #tpu.memory_space<vmem>>, vector<8x4xf32>
    %c0_1 = arith.constant 0 : index
    %c0_2 = arith.constant 0 : index
    %1 = vector.load %arg2[%c0_1, %c0_2] : memref<4x128xf32, #tpu.memory_space<vmem>>, vector<4x128xf32>
    %cst = arith.constant dense<0.000000e+00> : vector<8x128xf32>
    %2 = tpu.matmul %0, %1, %cst {dimension_numbers = #tpu.dot_dimension_numbers<[1], [0], [0], [1], [0, 0, 1, 1], [], []>} : vector<8x4xf32>, vector<4x128xf32>, vector<8x128xf32> -> vector<8x128xf32>
    %c0_3 = arith.constant 0 : index
    %c0_4 = arith.constant 0 : index
    %3 = vector.load %arg3[%c0_3, %c0_4] : memref<1x128xf32, #tpu.memory_space<vmem>>, vector<1x128xf32>
    %4 = vector.broadcast %3 : vector<1x128xf32> to vector<8x128xf32>
    %5 = arith.addf %2, %4 : vector<8x128xf32>
    %c0_5 = arith.constant 0 : index
    %c0_6 = arith.constant 0 : index
    %6 = vector.load %arg4[%c0_5, %c0_6] : memref<8x128xf32, #tpu.memory_space<vmem>>, vector<8x128xf32>
    tpu.vector_store %arg4[%c0_5, %c0_6], %5 {strides = array<i32>} : memref<8x128xf32, #tpu.memory_space<vmem>>, vector<8x128xf32>,
    return
  }
  func.func @transform_0(%arg0: i32) -> (i32, i32) {
    %c0_i32 = arith.constant 0 : i32
    %c0_i32_0 = arith.constant 0 : i32
    return %arg0, %c0_i32 : i32, i32
  }
  func.func @transform_1(%arg0: i32) -> (i32, i32) {
    %c0_i32 = arith.constant 0 : i32
    %c0_i32_0 = arith.constant 0 : i32
    %c0_i32_1 = arith.constant 0 : i32
    return %c0_i32, %c0_i32_0 : i32, i32
  }
  func.func @transform_2(%arg0: i32) -> (i32, i32) {
    %c0_i32 = arith.constant 0 : i32
    %c0_i32_0 = arith.constant 0 : i32
    %c0_i32_1 = arith.constant 0 : i32
    return %c0_i32, %c0_i32_0 : i32, i32
  }
  func.func @transform_3(%arg0: i32) -> (i32, i32) {
    %c0_i32 = arith.constant 0 : i32
    %c0_i32_0 = arith.constant 0 : i32
    return %arg0, %c0_i32 : i32, i32
  }
}

</mosaic_0001>

<llo_original>
// kernel: tpu_custom_call.1
$region0: #{tpu_custom_call.1}
  #allocation0 [shape = 'u32[]', space=smem, size = 0x4, offset = 0x4, fixed_abs, tag = 'smem constant byte address 0x4 - core index']
  #allocation1 [shape = 'u32[144,128]{1,0:T(1,128)}', space=vmem, size = 0x12000, scoped, tag = 'internal scratch']
  %s0 = inlined_call_operand.vmem [shape: f32[8,4], index: 0, kind: input, shape index: {}]
  %s1 = inlined_call_operand.vmem [shape: f32[4,128], index: 1, kind: input, shape index: {}]
  %s2 = inlined_call_operand.vmem [shape: f32[1,128], index: 2, kind: input, shape index: {}]
  %s3 = inlined_call_operand.hbm [shape: f32[8,128], index: 3, kind: output, shape index: {}]
  %s4 = sld [smem:[#allocation0]]
  $region22: #{tpu_custom_call.1} parent=0
    _
  %s6 = ssub.s32 1, %s4
  %s7 = scalar_select 0, %s6, %s4
  $region1: #{tpu_custom_call.1} parent=0
    #allocation2 [shape = 'u8[4096]{0}', space=vmem, size = 0x1000, scoped, tag = 'output window, operand 0, single buffered']
    #allocation3 [shape = 's32[1]{0}', space=sflag, size = 0x4, scoped, tag = 'scoped memory for tpu_custom_call.1']
    %8 = vsyncpa [#allocation3], 0
    // Predicated region
    $region2: #{tpu_custom_call.1} parent=1 // pred_check
      _
    $region3: #{tpu_custom_call.1} parent=1 // pred_check_branch
      %10 = sbr.rel (0) target = $region5
    $region4: #{tpu_custom_call.1} parent=1 // pred_region
      _
    $region5: #{tpu_custom_call.1} parent=1 // pred_fallthru
      _
    // Predicated region
    $region6: #{tpu_custom_call.1} parent=1 // pred_check
      _
    $region7: #{tpu_custom_call.1} parent=1 // pred_check_branch
      %12 = sbr.rel (0) target = $region9
    $region8: #{tpu_custom_call.1} parent=1 // pred_region
      _
    $region9: #{tpu_custom_call.1} parent=1 // pred_fallthru
      _
    // Predicated region
    $region10: #{tpu_custom_call.1} parent=1 // pred_check
      _
    $region11: #{tpu_custom_call.1} parent=1 // pred_check_branch
      %14 = sbr.rel (0) target = $region13
    $region12: #{tpu_custom_call.1} parent=1 // pred_region
      _
    $region13: #{tpu_custom_call.1} parent=1 // pred_fallthru
      _
    %v15 = vld [vmem:[%s0] sm:$0xff]
    %v16 = vld [vmem:[%s1] sm:$0xf]
    %v17 = vld [vmem:[%s2] sm:$0x1]
    %v19 = vlaneseq
    %v20 = vshrl.u32 %v19, 7
    %v21 = vsub.s32 0, %v20
    %v22 = vrot.slane %v17, %v21
    %vm24 = vcmask 31744
    %v26 = vsel %vm24, %v15, 0
    %vm28 = vcmask 1043456
    %v30 = vsel %vm28, %v16, 0
    %32 = vmatprep.subr.mxu0 0.0
    %33 = vmatpush1.msra.mxu0 %v30
    %34 = vmatprep.subr.mxu0 0.0
    %35 = vmatpush1.msra.mxu0 0.0
    %36 = vmatprep.subr.mxu0 0.0
    %37 = vmatpush1.msra.mxu0 0.0
    %38 = vmatprep.subr.mxu0 0.0
    %39 = vmatpush1.msra.mxu0 0.0
    %40 = vmatprep.subr.mxu0 0.0
    %41 = vmatpush1.msra.mxu0 0.0
    %42 = vmatprep.subr.mxu0 0.0
    %43 = vmatpush1.msra.mxu0 0.0
    %44 = vmatprep.subr.mxu0 0.0
    %45 = vmatpush1.msra.mxu0 0.0
    %46 = vmatprep.subr.mxu0 0.0
    %47 = vmatpush1.msra.mxu0 0.0
    %48 = vmatprep.subr.mxu0 0.0
    %49 = vmatpush1.msra.mxu0 0.0
    %50 = vmatprep.subr.mxu0 0.0
    %51 = vmatpush1.msra.mxu0 0.0
    %52 = vmatprep.subr.mxu0 0.0
    %53 = vmatpush1.msra.mxu0 0.0
    %54 = vmatprep.subr.mxu0 0.0
    %55 = vmatpush1.msra.mxu0 0.0
    %56 = vmatprep.subr.mxu0 0.0
    %57 = vmatpush1.msra.mxu0 0.0
    %58 = vmatprep.subr.mxu0 0.0
    %59 = vmatpush1.msra.mxu0 0.0
    %60 = vmatprep.subr.mxu0 0.0
    %61 = vmatpush1.msra.mxu0 0.0
    %62 = vmatprep.subr.mxu0 0.0
    %63 = vmatpush1.msra.mxu0 0.0
    %64 = vmatprep.subr.mxu0 0.0
    %65 = vmatpush1.msra.mxu0 0.0
    %66 = vmatprep.subr.mxu0 0.0
    %67 = vmatpush1.msra.mxu0 0.0
    %68 = vmatprep.subr.mxu0 0.0
    %69 = vmatpush1.msra.mxu0 0.0
    %70 = vmatprep.subr.mxu0 0.0
    %71 = vmatpush1.msra.mxu0 0.0
    %72 = vmatprep.subr.mxu0 0.0
    %73 = vmatpush1.msra.mxu0 0.0
    %74 = vmatprep.subr.mxu0 0.0
    %75 = vmatpush1.msra.mxu0 0.0
    %76 = vmatprep.subr.mxu0 0.0
    %77 = vmatpush1.msra.mxu0 0.0
    %78 = vmatprep.subr.mxu0 0.0
    %79 = vmatpush1.msra.mxu0 0.0
    %80 = vmatprep.subr.mxu0 0.0
    %81 = vmatpush1.msra.mxu0 0.0
    %82 = vmatprep.subr.mxu0 0.0
    %83 = vmatpush1.msra.mxu0 0.0
    %84 = vmatprep.subr.mxu0 0.0
    %85 = vmatpush1.msra.mxu0 0.0
    %86 = vmatprep.subr.mxu0 0.0
    %87 = vmatpush1.msra.mxu0 0.0
    %88 = vmatprep.subr.mxu0 0.0
    %89 = vmatpush1.msra.mxu0 0.0
    %90 = vmatprep.subr.mxu0 0.0
    %91 = vmatpush1.msra.mxu0 0.0
    %92 = vmatprep.subr.mxu0 0.0
    %93 = vmatpush1.msra.mxu0 0.0
    %94 = vmatprep.subr.mxu0 0.0
    %95 = vmatpush1.msra.mxu0 0.0
    %96 = vmatprep.mubr.f32.mxu0 0.0
    %97 = vmatmul.mubr.f32.gmra.mrb[0].mxu0 %v26
    %v98 = vpop.f32.mrb[0].mxu0
    %v99 = vadd.f32 %v22, %v98
    %v100 = vpop.f32.mrb[0].mxu0
    %101 = vdwg.mxu0
    %102 = vst [vmem:[#allocation2] sm:$0xff] %v99
    // Predicated region
    $region14: #{tpu_custom_call.1} parent=1 // pred_check
      _
    $region15: #{tpu_custom_call.1} parent=1 // pred_check_branch
      %104 = sbr.rel (0) target = $region17
    $region16: #{tpu_custom_call.1} parent=1 // pred_region
      %s106 = ssub.s32 128, 128
      %107 = vsyncadd [#allocation3], %s106
      %s109 = sshll.u32 [#allocation2], 4
      %s110 = int_to_ptr.vmem [resolvable:$true] %s109
      %112 = dma.vmem_to_hbm [thread:$0]  %s110, 128, %s3, [#allocation3]
    $region17: #{tpu_custom_call.1} parent=1 // pred_fallthru
      _
    // Predicated region
    $region18: #{tpu_custom_call.1} parent=1 // pred_check
      _
    $region19: #{tpu_custom_call.1} parent=1 // pred_check_branch
      %114 = sbr.rel (0) target = $region21
    $region20: #{tpu_custom_call.1} parent=1 // pred_region
      %115 = dma.done [#allocation3], 128
    $region21: #{tpu_custom_call.1} parent=1 // pred_fallthru
      _
    %116 = vsyncpa [#allocation3], 1

</llo_original>
